<compile_context>
chip_gen: v6e
topology: v6e:2x2x1
jax: 0.10.0
libtpu: 0.0.40
codegen_flags: <defaults>
</compile_context>

<pallas_src>
import math
import functools

import jax
import jax.numpy as jnp
from jax.experimental import pallas as pl
from jax.experimental.pallas import tpu as pltpu

EPS = 1e-5
_LANE = 128
_VMEM_LIMIT = 32 * 1024 * 1024  # conservative; fits v5e/v6e/v7x scoped VMEM


def _round_up(v, m):
    return ((v + m - 1) // m) * m


def _pad2(a, rows, cols, val=0.0):
    a = jnp.asarray(a, jnp.float32)
    return jnp.pad(a, ((0, rows - a.shape[0]), (0, cols - a.shape[1])),
                   constant_values=val)


# ---------------------------------------------------------------------------
# Kernels
# ---------------------------------------------------------------------------

def _accumulate_stats(y, mean_ref, rstd_ref, n_rows):
    """Accumulate column sum / sum-of-squares of y (f32) into resident outputs;
    finalize to mean / rsqrt(var + eps) on the last batch tile."""
    i = pl.program_id(0)

    @pl.when(i == 0)
    def _():
        mean_ref[...] = jnp.zeros_like(mean_ref)
        rstd_ref[...] = jnp.zeros_like(rstd_ref)

    mean_ref[...] += jnp.sum(y, axis=0, keepdims=True)          # XLU reduce
    rstd_ref[...] += jnp.sum(y * y, axis=0, keepdims=True)

    @pl.when(i == pl.num_programs(0) - 1)
    def _():
        inv_n = 1.0 / n_rows
        m = mean_ref[...] * inv_n
        var = jnp.maximum(rstd_ref[...] * inv_n - m * m, 0.0)   # f32 stats
        mean_ref[...] = m
        rstd_ref[...] = jax.lax.rsqrt(var + EPS)                # EUP


def _linear_stats_kernel(x_ref, w_ref, y_ref, mean_ref, rstd_ref, *, n_rows):
    """First layer: y = x @ W (bf16 MXU, f32 acc); accumulate BN stats of y."""
    y = jnp.dot(x_ref[...], w_ref[...], preferred_element_type=jnp.float32)
    y_ref[...] = y
    _accumulate_stats(y, mean_ref, rstd_ref, n_rows)


def _bn_relu_linear_stats_kernel(yp_ref, pm_ref, pr_ref, g_ref, b_ref, w_ref,
                                 y_ref, mean_ref, rstd_ref, *, n_rows):
    """Hidden layer k: apply previous layer's BN+ReLU (full-batch stats), then
    y = h @ W (bf16 MXU); accumulate this layer's BN stats."""
    h = (yp_ref[...] - pm_ref[...]) * (pr_ref[...] * g_ref[...]) + b_ref[...]
    h = jnp.maximum(h, 0.0).astype(jnp.bfloat16)
    y = jnp.dot(h, w_ref[...], preferred_element_type=jnp.float32)
    y_ref[...] = y
    _accumulate_stats(y, mean_ref, rstd_ref, n_rows)


def _bn_relu_linear_out_kernel(yp_ref, pm_ref, pr_ref, g_ref, b_ref,
                               w_ref, bias_ref, o_ref):
    """Output layer: BN+ReLU of last hidden pre-activation, then Linear + bias."""
    h = (yp_ref[...] - pm_ref[...]) * (pr_ref[...] * g_ref[...]) + b_ref[...]
    h = jnp.maximum(h, 0.0).astype(jnp.bfloat16)
    o_ref[...] = (jnp.dot(h, w_ref[...], preferred_element_type=jnp.float32)
                  + bias_ref[...]).astype(o_ref.dtype)


# ---------------------------------------------------------------------------
# pallas_call wrappers (batch-tiled grids)
# ---------------------------------------------------------------------------

def _linear_stats_call(x, w, tb):
    n, din = x.shape
    dh = w.shape[1]
    kernel = functools.partial(_linear_stats_kernel, n_rows=float(n))
    return pl.pallas_call(
        kernel,
        grid=(n // tb,),
        in_specs=[pl.BlockSpec((tb, din), lambda i: (i, 0)),
                  pl.BlockSpec((din, dh), lambda i: (0, 0))],
        out_specs=[pl.BlockSpec((tb, dh), lambda i: (i, 0)),
                   pl.BlockSpec((1, dh), lambda i: (0, 0)),
                   pl.BlockSpec((1, dh), lambda i: (0, 0))],
        out_shape=[jax.ShapeDtypeStruct((n, dh), jnp.float32),
                   jax.ShapeDtypeStruct((1, dh), jnp.float32),
                   jax.ShapeDtypeStruct((1, dh), jnp.float32)],
        compiler_params=pltpu.CompilerParams(
            dimension_semantics=("arbitrary",),   # stats accumulate across tiles
            vmem_limit_bytes=_VMEM_LIMIT),
    )(x, w)


def _bn_relu_linear_stats_call(y_prev, mean, rstd, gamma, beta, w, tb):
    n, dh_in = y_prev.shape
    dh_out = w.shape[1]
    vec = pl.BlockSpec((1, dh_in), lambda i: (0, 0))
    kernel = functools.partial(_bn_relu_linear_stats_kernel, n_rows=float(n))
    return pl.pallas_call(
        kernel,
        grid=(n // tb,),
        in_specs=[pl.BlockSpec((tb, dh_in), lambda i: (i, 0)),
                  vec, vec, vec, vec,
                  pl.BlockSpec((dh_in, dh_out), lambda i: (0, 0))],
        out_specs=[pl.BlockSpec((tb, dh_out), lambda i: (i, 0)),
                   pl.BlockSpec((1, dh_out), lambda i: (0, 0)),
                   pl.BlockSpec((1, dh_out), lambda i: (0, 0))],
        out_shape=[jax.ShapeDtypeStruct((n, dh_out), jnp.float32),
                   jax.ShapeDtypeStruct((1, dh_out), jnp.float32),
                   jax.ShapeDtypeStruct((1, dh_out), jnp.float32)],
        compiler_params=pltpu.CompilerParams(
            dimension_semantics=("arbitrary",),
            vmem_limit_bytes=_VMEM_LIMIT),
    )(y_prev, mean, rstd, gamma, beta, w)


def _bn_relu_linear_out_call(y_prev, mean, rstd, gamma, beta, w, bias, tb):
    n, dh = y_prev.shape
    dout = w.shape[1]
    vec = pl.BlockSpec((1, dh), lambda i: (0, 0))
    return pl.pallas_call(
        _bn_relu_linear_out_kernel,
        grid=(n // tb,),
        in_specs=[pl.BlockSpec((tb, dh), lambda i: (i, 0)),
                  vec, vec, vec, vec,
                  pl.BlockSpec((dh, dout), lambda i: (0, 0)),
                  pl.BlockSpec((1, dout), lambda i: (0, 0))],
        out_specs=pl.BlockSpec((tb, dout), lambda i: (i, 0)),
        out_shape=jax.ShapeDtypeStruct((n, dout), jnp.float32),
        compiler_params=pltpu.CompilerParams(
            dimension_semantics=("parallel",),    # independent batch tiles
            vmem_limit_bytes=_VMEM_LIMIT),
    )(y_prev, mean, rstd, gamma, beta, w, bias)


# ---------------------------------------------------------------------------
# Forward wrapper
# ---------------------------------------------------------------------------

def klayer_net_forward(x, params, K, *, batch_tile=128):
    """KLayerNet forward via batch-tiled Pallas kernels.

    params layout (as produced by init_params):
      [W_1, b_1, gamma_1, beta_1, ..., W_K, b_K, gamma_K, beta_K, W_out, b_out]
    Hidden biases b_k are accepted but unused by the kernels (exactly cancelled
    by BatchNorm's mean subtraction).
    """
    n, d_in = x.shape
    d_h = params[0].shape[1]
    d_out = params[-1].shape[-1]

    din_p = _round_up(d_in, _LANE)
    dh_p = _round_up(d_h, _LANE)
    dout_p = _round_up(d_out, _LANE)

    # Batch tile: must divide N (BN statistics cover the whole batch, so we do
    # not pad the batch axis).  Fall back to a single tile otherwise.
    tb = batch_tile if (n % batch_tile == 0) else n

    # ---- layer 1: Linear (bias dropped) + stats ----
    x_p = _pad2(x, n, din_p).astype(jnp.bfloat16)
    w = _pad2(params[0], din_p, dh_p).astype(jnp.bfloat16)
    gamma = _pad2(params[2], 1, dh_p, 1.0)
    beta = _pad2(params[3], 1, dh_p, 0.0)
    y, mean, rstd = _linear_stats_call(x_p, w, tb)

    # ---- layers 2..K: fused BN+ReLU (previous layer) -> Linear -> stats ----
    for layer in range(1, K):
        w_k = _pad2(params[4 * layer], dh_p, dh_p).astype(jnp.bfloat16)
        g_k = _pad2(params[4 * layer + 2], 1, dh_p, 1.0)
        be_k = _pad2(params[4 * layer + 3], 1, dh_p, 0.0)
        y, mean, rstd = _bn_relu_linear_stats_call(y, mean, rstd, gamma, beta, w_k, tb)
        gamma, beta = g_k, be_k

    # ---- output layer: fused BN+ReLU -> Linear(+bias), lane-dense store ----
    w_out = _pad2(params[4 * K], dh_p, dout_p).astype(jnp.bfloat16)
    b_out = _pad2(params[4 * K + 1], 1, dout_p)
    out_p = _bn_relu_linear_out_call(y, mean, rstd, gamma, beta, w_out, b_out, tb)

    return out_p[:, :d_out]

    # TODO(synk): for large D_H, stream each layer's weight matrix with a manual
    # double-buffered DMA (memory_space=pl.ANY + make_async_copy) instead of a
    # whole-array BlockSpec, to overlap weight fetch with the previous matmul.


# ---------------------------------------------------------------------------
# Params / references
# ---------------------------------------------------------------------------

def init_params(key, d_in, d_out, d_h, k):
    """Mimic nn.Linear's U(-1/sqrt(fan_in), 1/sqrt(fan_in)) init and
    BatchNorm1d's gamma=1, beta=0."""
    params = []
    in_dims = [d_in] + [d_h] * (k - 1)
    layer_keys = jax.random.split(key, k + 1)
    for i in range(k):
        fan_in = in_dims[i]
        bound = 1.0 / math.sqrt(fan_in)
        kw, kb = jax.random.split(layer_keys[i])
        w = jax.random.uniform(kw, (fan_in, d_h), jnp.float32, -bound, bound)
        b = jax.random.uniform(kb, (1, d_h), jnp.float32, -bound, bound)
        params += [w, b, jnp.ones((1, d_h), jnp.float32), jnp.zeros((1, d_h), jnp.float32)]
    bound = 1.0 / math.sqrt(d_h)
    kw, kb = jax.random.split(layer_keys[k])
    w_out = jax.random.uniform(kw, (d_h, d_out), jnp.float32, -bound, bound)
    b_out = jax.random.uniform(kb, (1, d_out), jnp.float32, -bound, bound)
    params += [w_out, b_out]
    return params


def reference_forward_matched(x, params, K):
    """Pure-JAX reference using the SAME numerics as the kernel chain
    (bf16 matmuls, f32 stats, E[y^2]-E[y]^2 variance, hidden bias dropped)."""
    h = x.astype(jnp.float32)
    idx = 0
    for _ in range(K):
        w, _, g, be = params[idx:idx + 4]
        idx += 4
        y = jnp.dot(h.astype(jnp.bfloat16), w.astype(jnp.bfloat16),
                    preferred_element_type=jnp.float32)
        m = jnp.mean(y, axis=0, keepdims=True)
        var = jnp.maximum(jnp.mean(y * y, axis=0, keepdims=True) - m * m, 0.0)
        r = jax.lax.rsqrt(var + EPS)
        h = jnp.maximum((y - m) * (r * g) + be, 0.0)
    w_out, b_out = params[idx], params[idx + 1]
    return jnp.dot(h.astype(jnp.bfloat16), w_out.astype(jnp.bfloat16),
                   preferred_element_type=jnp.float32) + b_out


def reference_forward_module(x, params, K):
    """Exact f32 emulation of the PyTorch module forward (train-mode BN,
    biased variance, eps=1e-5, hidden biases included)."""
    h = x.astype(jnp.float32)
    idx = 0
    for _ in range(K):
        w, b, g, be = params[idx:idx + 4]
        idx += 4
        h = h @ w + b
        m = jnp.mean(h, axis=0, keepdims=True)
        v = jnp.mean(jnp.square(h - m), axis=0, keepdims=True)
        h = jnp.maximum((h - m) * jax.lax.rsqrt(v + EPS) * g + be, 0.0)
    return h @ params[idx] + params[idx + 1]


if __name__ == "__main__":
    # Small logical shapes (consistent with the module); the wrapper pads the
    # feature dims to 128 lanes internally.  N=256 exercises the batch grid
    # (two 128-row tiles) with full-batch BatchNorm statistics.
    N, D_IN, D_OUT, D_H, K = 256, 8, 8, 32, 2

    key = jax.random.PRNGKey(0)
    k_x, k_p = jax.random.split(key)
    x = jax.random.normal(k_x, (N, D_IN), jnp.float32)
    params = init_params(k_p, D_IN, D_OUT, D_H, K)

    out = jax.block_until_ready(klayer_net_forward(x, params, K))
    assert out.shape == (N, D_OUT)

    # Tight check vs. a reference with identical numerics (bf16 MXU, f32 stats).
    ref_matched = reference_forward_matched(x, params, K)
    assert jnp.allclose(out, ref_matched, atol=5e-3, rtol=5e-3), \
        "mismatch vs matched (bf16) reference"

    # Looser check vs. the exact f32 PyTorch-module semantics (bf16 MXU error only).
    ref_module = reference_forward_module(x, params, K)
    assert jnp.allclose(out, ref_module, atol=1e-1, rtol=1e-1), \
        "mismatch vs f32 module reference"

    print("KERNEL_OK")
</pallas_src>

<mosaic_0001>
module attributes {stable_mosaic.version = 11 : i64} {
  func.func @_linear_stats_kernel(%arg0: i32, %arg1: memref<128x128xbf16, #tpu.memory_space<vmem>>, %arg2: memref<128x128xbf16, #tpu.memory_space<vmem>>, %arg3: memref<128x128xf32, #tpu.memory_space<vmem>>, %arg4: memref<1x128xf32, #tpu.memory_space<vmem>>, %arg5: memref<1x128xf32, #tpu.memory_space<vmem>>) attributes {dimension_semantics = [#tpu.dimension_semantics<arbitrary>], iteration_bounds = array<i64: 2>, scalar_prefetch = 0 : i64, scratch_operands = 0 : i64, tpu.core_type = #tpu.core_type<tc>, window_params = [{transform_indices = @transform_0, window_bounds = array<i64: 128, 128>}, {pipeline_mode = #tpu.pipeline_mode<synchronous>, transform_indices = @transform_1, window_bounds = array<i64: 128, 128>}, {transform_indices = @transform_2, window_bounds = array<i64: 128, 128>}, {pipeline_mode = #tpu.pipeline_mode<synchronous>, transform_indices = @transform_3, window_bounds = array<i64: 1, 128>}, {pipeline_mode = #tpu.pipeline_mode<synchronous>, transform_indices = @transform_4, window_bounds = array<i64: 1, 128>}]} {
    %c0 = arith.constant 0 : index
    %c0_0 = arith.constant 0 : index
    %0 = vector.load %arg1[%c0, %c0_0] : memref<128x128xbf16, #tpu.memory_space<vmem>>, vector<128x128xbf16>
    %c0_1 = arith.constant 0 : index
    %c0_2 = arith.constant 0 : index
    %1 = vector.load %arg2[%c0_1, %c0_2] : memref<128x128xbf16, #tpu.memory_space<vmem>>, vector<128x128xbf16>
    %cst = arith.constant dense<0.000000e+00> : vector<128x128xf32>
    %2 = tpu.matmul %0, %1, %cst {dimension_numbers = #tpu.dot_dimension_numbers<[1], [0], [0], [1], [0, 0, 1, 1], [], []>} : vector<128x128xbf16>, vector<128x128xbf16>, vector<128x128xf32> -> vector<128x128xf32>
    %c0_3 = arith.constant 0 : index
    %c0_4 = arith.constant 0 : index
    %3 = vector.load %arg3[%c0_3, %c0_4] : memref<128x128xf32, #tpu.memory_space<vmem>>, vector<128x128xf32>
    tpu.vector_store %arg3[%c0_3, %c0_4], %2 {strides = array<i32>} : memref<128x128xf32, #tpu.memory_space<vmem>>, vector<128x128xf32>,
    %c0_i32 = arith.constant 0 : i32
    %4 = arith.cmpi eq, %arg0, %c0_i32 : i32
    %5 = arith.extui %4 : i1 to i32
    %c0_i32_5 = arith.constant 0 : i32
    %6 = arith.cmpi ne, %5, %c0_i32_5 : i32
    scf.if %6 {
      %cst_17 = arith.constant 0.000000e+00 : f32
      %21 = vector.broadcast %cst_17 : f32 to vector<1x128xf32>
      %c0_18 = arith.constant 0 : index
      %c0_19 = arith.constant 0 : index
      %22 = vector.load %arg4[%c0_18, %c0_19] : memref<1x128xf32, #tpu.memory_space<vmem>>, vector<1x128xf32>
      tpu.vector_store %arg4[%c0_18, %c0_19], %21 {strides = array<i32>} : memref<1x128xf32, #tpu.memory_space<vmem>>, vector<1x128xf32>,
      %cst_20 = arith.constant 0.000000e+00 : f32
      %23 = vector.broadcast %cst_20 : f32 to vector<1x128xf32>
      %c0_21 = arith.constant 0 : index
      %c0_22 = arith.constant 0 : index
      %24 = vector.load %arg5[%c0_21, %c0_22] : memref<1x128xf32, #tpu.memory_space<vmem>>, vector<1x128xf32>
      tpu.vector_store %arg5[%c0_21, %c0_22], %23 {strides = array<i32>} : memref<1x128xf32, #tpu.memory_space<vmem>>, vector<1x128xf32>,
    } else {
    }
    %c0_6 = arith.constant 0 : index
    %c0_7 = arith.constant 0 : index
    %7 = vector.load %arg4[%c0_6, %c0_7] : memref<1x128xf32, #tpu.memory_space<vmem>>, vector<1x128xf32>
    %cst_8 = arith.constant dense<0.000000e+00> : vector<128xf32>
    %8 = vector.multi_reduction <add>, %2, %cst_8 [0] : vector<128x128xf32> to vector<128xf32>
    %9 = vector.shape_cast %8 : vector<128xf32> to vector<1x128xf32>
    %10 = arith.addf %7, %9 : vector<1x128xf32>
    %c0_9 = arith.constant 0 : index
    %c0_10 = arith.constant 0 : index
    %11 = vector.load %arg4[%c0_9, %c0_10] : memref<1x128xf32, #tpu.memory_space<vmem>>, vector<1x128xf32>
    tpu.vector_store %arg4[%c0_9, %c0_10], %10 {strides = array<i32>} : memref<1x128xf32, #tpu.memory_space<vmem>>, vector<1x128xf32>,
    %c0_11 = arith.constant 0 : index
    %c0_12 = arith.constant 0 : index
    %12 = vector.load %arg5[%c0_11, %c0_12] : memref<1x128xf32, #tpu.memory_space<vmem>>, vector<1x128xf32>
    %13 = arith.mulf %2, %2 : vector<128x128xf32>
    %cst_13 = arith.constant dense<0.000000e+00> : vector<128xf32>
    %14 = vector.multi_reduction <add>, %13, %cst_13 [0] : vector<128x128xf32> to vector<128xf32>
    %15 = vector.shape_cast %14 : vector<128xf32> to vector<1x128xf32>
    %16 = arith.addf %12, %15 : vector<1x128xf32>
    %c0_14 = arith.constant 0 : index
    %c0_15 = arith.constant 0 : index
    %17 = vector.load %arg5[%c0_14, %c0_15] : memref<1x128xf32, #tpu.memory_space<vmem>>, vector<1x128xf32>
    tpu.vector_store %arg5[%c0_14, %c0_15], %16 {strides = array<i32>} : memref<1x128xf32, #tpu.memory_space<vmem>>, vector<1x128xf32>,
    %c1_i32 = arith.constant 1 : i32
    %18 = arith.cmpi eq, %arg0, %c1_i32 : i32
    %19 = arith.extui %18 : i1 to i32
    %c0_i32_16 = arith.constant 0 : i32
    %20 = arith.cmpi ne, %19, %c0_i32_16 : i32
    scf.if %20 {
      %c0_17 = arith.constant 0 : index
      %c0_18 = arith.constant 0 : index
      %21 = vector.load %arg4[%c0_17, %c0_18] : memref<1x128xf32, #tpu.memory_space<vmem>>, vector<1x128xf32>
      %cst_19 = arith.constant 3.906250e-03 : f32
      %22 = vector.broadcast %cst_19 : f32 to vector<1x128xf32>
      %23 = arith.mulf %21, %22 : vector<1x128xf32>
      %c0_20 = arith.constant 0 : index
      %c0_21 = arith.constant 0 : index
      %24 = vector.load %arg5[%c0_20, %c0_21] : memref<1x128xf32, #tpu.memory_space<vmem>>, vector<1x128xf32>
      %cst_22 = arith.constant 3.906250e-03 : f32
      %25 = vector.broadcast %cst_22 : f32 to vector<1x128xf32>
      %26 = arith.mulf %24, %25 : vector<1x128xf32>
      %27 = arith.mulf %23, %23 : vector<1x128xf32>
      %28 = arith.subf %26, %27 : vector<1x128xf32>
      %cst_23 = arith.constant 0.000000e+00 : f32
      %29 = vector.broadcast %cst_23 : f32 to vector<1x128xf32>
      %30 = arith.maximumf %28, %29 : vector<1x128xf32>
      %c0_24 = arith.constant 0 : index
      %c0_25 = arith.constant 0 : index
      %31 = vector.load %arg4[%c0_24, %c0_25] : memref<1x128xf32, #tpu.memory_space<vmem>>, vector<1x128xf32>
      tpu.vector_store %arg4[%c0_24, %c0_25], %23 {strides = array<i32>} : memref<1x128xf32, #tpu.memory_space<vmem>>, vector<1x128xf32>,
      %cst_26 = arith.constant 9.99999974E-6 : f32
      %32 = vector.broadcast %cst_26 : f32 to vector<1x128xf32>
      %33 = arith.addf %30, %32 : vector<1x128xf32>
      %34 = math.rsqrt %33 : vector<1x128xf32>
      %c0_27 = arith.constant 0 : index
      %c0_28 = arith.constant 0 : index
      %35 = vector.load %arg5[%c0_27, %c0_28] : memref<1x128xf32, #tpu.memory_space<vmem>>, vector<1x128xf32>
      tpu.vector_store %arg5[%c0_27, %c0_28], %34 {strides = array<i32>} : memref<1x128xf32, #tpu.memory_space<vmem>>, vector<1x128xf32>,
    } else {
    }
    return
  }
  func.func @transform_0(%arg0: i32) -> (i32, i32) {
    %c0_i32 = arith.constant 0 : i32
    %c0_i32_0 = arith.constant 0 : i32
    return %arg0, %c0_i32 : i32, i32
  }
  func.func @transform_1(%arg0: i32) -> (i32, i32) {
    %c0_i32 = arith.constant 0 : i32
    %c0_i32_0 = arith.constant 0 : i32
    %c0_i32_1 = arith.constant 0 : i32
    return %c0_i32, %c0_i32_0 : i32, i32
  }
  func.func @transform_2(%arg0: i32) -> (i32, i32) {
    %c0_i32 = arith.constant 0 : i32
    %c0_i32_0 = arith.constant 0 : i32
    return %arg0, %c0_i32 : i32, i32
  }
  func.func @transform_3(%arg0: i32) -> (i32, i32) {
    %c0_i32 = arith.constant 0 : i32
    %c0_i32_0 = arith.constant 0 : i32
    %c0_i32_1 = arith.constant 0 : i32
    return %c0_i32, %c0_i32_0 : i32, i32
  }
  func.func @transform_4(%arg0: i32) -> (i32, i32) {
    %c0_i32 = arith.constant 0 : i32
    %c0_i32_0 = arith.constant 0 : i32
    %c0_i32_1 = arith.constant 0 : i32
    return %c0_i32, %c0_i32_0 : i32, i32
  }
}

</mosaic_0001>

<llo_original>
// kernel: tpu_custom_call.1
$region0: #{tpu_custom_call.1}
  #allocation0 [shape = 'u32[]', space=smem, size = 0x4, offset = 0x4, fixed_abs, tag = 'smem constant byte address 0x4 - core index']
  #allocation1 [shape = 'u32[144,128]{1,0:T(1,128)}', space=vmem, size = 0x12000, scoped, tag = 'internal scratch']
  %s0 = inlined_call_operand.hbm [shape: bf16[256,128], index: 0, kind: input, shape index: {}]
  %s1 = inlined_call_operand.hbm [shape: bf16[128,128], index: 1, kind: input, shape index: {}]
  %s2 = inlined_call_operand.hbm [shape: f32[256,128], index: 2, kind: output, shape index: {0}]
  %s3 = inlined_call_operand.hbm [shape: f32[1,128], index: 3, kind: output, shape index: {1}]
  %s4 = inlined_call_operand.hbm [shape: f32[1,128], index: 4, kind: output, shape index: {2}]
  %5 = xla_tuple %s2, %s3, %s4
  %s6 = sld [smem:[#allocation0]]
  $region73: #{tpu_custom_call.1} parent=0
    _
  %s8 = ssub.s32 1, %s6
  %s9 = scalar_select 0, %s8, %s6
  $region1: #{tpu_custom_call.1} parent=0
    #allocation2 [shape = 'u8[65536]{0}', space=vmem, size = 0x10000, scoped, tag = 'input window, operand 0']
    #allocation3 [shape = 's32[2]{0}', space=sflag, size = 0x8, scoped, tag = 'scoped memory for tpu_custom_call.1']
    #allocation4 [shape = 's32[2]{0}', space=sflag, size = 0x8, scoped, tag = 'scoped memory for tpu_custom_call.1']
    #allocation5 [shape = 'u8[32768]{0}', space=vmem, size = 0x8000, scoped, tag = 'input window, operand 1, single buffered']
    #allocation6 [shape = 's32[1]{0}', space=sflag, size = 0x4, scoped, tag = 'scoped memory for tpu_custom_call.1']
    #allocation7 [shape = 'u8[131072]{0}', space=vmem, size = 0x20000, scoped, tag = 'output window, operand 0']
    #allocation8 [shape = 'u8[512]{0}', space=vmem, size = 0x400, scoped, tag = 'output window, operand 1, single buffered']
    #allocation9 [shape = 's32[1]{0}', space=sflag, size = 0x4, scoped, tag = 'scoped memory for tpu_custom_call.1']
    #allocation10 [shape = 'u8[512]{0}', space=vmem, size = 0x400, scoped, tag = 'output window, operand 2, single buffered']
    %10 = vsyncpa [#allocation3], 0
    %s11 = scalar_lea.sflag [#allocation3], 1
    %12 = vsyncpa %s11, 0
    %13 = vsyncpa [#allocation6], 0
    %14 = vsyncpa [#allocation4], 0
    %s15 = scalar_lea.sflag [#allocation4], 1
    %16 = vsyncpa %s15, 0
    %17 = vsyncpa [#allocation9], 0
    loop: start=0, step=1, limit=4
    $region2: #{tpu_custom_call.1} parent=1 // loop_pre_header
      _
    $region3: #{tpu_custom_call.1} parent=1 // loop_header
      %s19 = sphi 0, %s23
      %p20 = scmp.ge.s32.totalorder %s19, 4
      %s29 = sphi 0, %s31
      %s32 = sphi 0, %s29
      %s33 = sphi 0, %s32
      %s49 = sphi 0, %s33
      %s53 = sphi 0, %s53
      %s55 = sphi 0, %s53
      %s56 = sphi 0, %s55
      %s70 = sphi 0, %s56
      %s76 = sphi 0, %s78
      %s79 = sphi 0, %s76
      %s80 = sphi 0, %s79
      %s96 = sphi 0, %s80
      %s100 = sphi 0, %s100
      %s102 = sphi 0, %s100
      %s103 = sphi 0, %s102
      %s117 = sphi 0, %s103
      %s121 = sphi 0, %s121
      %s123 = sphi 0, %s121
      %s124 = sphi 0, %s123
      %s138 = sphi 0, %s124
    $region4: #{tpu_custom_call.1} parent=1 // loop_header_branch
      %22 = sbr.rel (%p20) target = $region8
    $region5: #{tpu_custom_call.1} parent=1 // loop_body
      %s24 = ssub.s32 %s19, 1
      %s25 = ssub.s32 %s19, 2
      %s26 = sadd.s32 %s19, 1
      %s27 = ssub.s32 %s19, %s26
      %p28 = scmp.eq.s32.totalorder %s27, 0
      %s30 = sadd.s32 %s29, 1
      %s31 = scalar_select %p28, %s29, %s30
      %p34 = pneg %p28
      %p35 = scmp.eq.s32.totalorder %s19, 1
      %p36 = por %p34, %p35
      %p37 = scmp.ne.s32.totalorder %s29, %s32
      %p38 = scmp.eq.s32.totalorder %s19, 0
      %p39 = por %p37, %p38
      %p40 = scmp.ne.s32.totalorder %s29, %s32
      %p41 = scmp.eq.s32.totalorder %s24, 1
      %p42 = por %p40, %p41
      %p43 = scmp.ne.s32.totalorder %s32, %s33
      %p44 = scmp.eq.s32.totalorder %s24, 0
      %p45 = por %p43, %p44
      %p46 = scmp.ne.s32.totalorder %s32, %s33
      %p47 = scmp.eq.s32.totalorder %s25, 1
      %p48 = por %p46, %p47
      %p50 = scmp.ne.s32.totalorder %s33, %s49
      %p51 = scmp.eq.s32.totalorder %s25, 0
      %p52 = por %p50, %p51
      %s54 = sadd.s32 %s53, 1
      %p57 = scmp.eq.s32.totalorder %s19, 1
      %p58 = scmp.ne.s32.totalorder %s53, %s55
      %p59 = scmp.eq.s32.totalorder %s19, 0
      %p60 = por %p58, %p59
      %p61 = scmp.ne.s32.totalorder %s53, %s55
      %p62 = scmp.eq.s32.totalorder %s24, 1
      %p63 = por %p61, %p62
      %p64 = scmp.ne.s32.totalorder %s55, %s56
      %p65 = scmp.eq.s32.totalorder %s24, 0
      %p66 = por %p64, %p65
      %p67 = scmp.ne.s32.totalorder %s55, %s56
      %p68 = scmp.eq.s32.totalorder %s25, 1
      %p69 = por %p67, %p68
      %p71 = scmp.ne.s32.totalorder %s56, %s70
      %p72 = scmp.eq.s32.totalorder %s25, 0
      %p73 = por %p71, %p72
      %s74 = ssub.s32 %s19, %s26
      %p75 = scmp.eq.s32.totalorder %s74, 0
      %s77 = sadd.s32 %s76, 1
      %s78 = scalar_select %p75, %s76, %s77
      %p81 = pneg %p75
      %p82 = scmp.eq.s32.totalorder %s19, 1
      %p83 = por %p81, %p82
      %p84 = scmp.ne.s32.totalorder %s76, %s79
      %p85 = scmp.eq.s32.totalorder %s19, 0
      %p86 = por %p84, %p85
      %p87 = scmp.ne.s32.totalorder %s76, %s79
      %p88 = scmp.eq.s32.totalorder %s24, 1
      %p89 = por %p87, %p88
      %p90 = scmp.ne.s32.totalorder %s79, %s80
      %p91 = scmp.eq.s32.totalorder %s24, 0
      %p92 = por %p90, %p91
      %p93 = scmp.ne.s32.totalorder %s79, %s80
      %p94 = scmp.eq.s32.totalorder %s25, 1
      %p95 = por %p93, %p94
      %p97 = scmp.ne.s32.totalorder %s80, %s96
      %p98 = scmp.eq.s32.totalorder %s25, 0
      %p99 = por %p97, %p98
      %s101 = sadd.s32 %s100, 1
      %p104 = scmp.eq.s32.totalorder %s19, 1
      %p105 = scmp.ne.s32.totalorder %s100, %s102
      %p106 = scmp.eq.s32.totalorder %s19, 0
      %p107 = por %p105, %p106
      %p108 = scmp.ne.s32.totalorder %s100, %s102
      %p109 = scmp.eq.s32.totalorder %s24, 1
      %p110 = por %p108, %p109
      %p111 = scmp.ne.s32.totalorder %s102, %s103
      %p112 = scmp.eq.s32.totalorder %s24, 0
      %p113 = por %p111, %p112
      %p114 = scmp.ne.s32.totalorder %s102, %s103
      %p115 = scmp.eq.s32.totalorder %s25, 1
      %p116 = por %p114, %p115
      %p118 = scmp.ne.s32.totalorder %s103, %s117
      %p119 = scmp.eq.s32.totalorder %s25, 0
      %p120 = por %p118, %p119
      %s122 = sadd.s32 %s121, 1
      %p125 = scmp.eq.s32.totalorder %s19, 1
      %p126 = scmp.ne.s32.totalorder %s121, %s123
      %p127 = scmp.eq.s32.totalorder %s19, 0
      %p128 = por %p126, %p127
      %p129 = scmp.ne.s32.totalorder %s121, %s123
      %p130 = scmp.eq.s32.totalorder %s24, 1
      %p131 = por %p129, %p130
      %p132 = scmp.ne.s32.totalorder %s123, %s124
      %p133 = scmp.eq.s32.totalorder %s24, 0
      %p134 = por %p132, %p133
      %p135 = scmp.ne.s32.totalorder %s123, %s124
      %p136 = scmp.eq.s32.totalorder %s25, 1
      %p137 = por %p135, %p136
      %p139 = scmp.ne.s32.totalorder %s124, %s138
      %p140 = scmp.eq.s32.totalorder %s25, 0
      %p141 = por %p139, %p140
      %p142 = scmp.le.s32.totalorder 1, %s19
      %p143 = scmp.lt.s32.totalorder %s19, 3
      %p144 = pnand %p142, %p143
      %p145 = pneg %p144
      // Predicated region
      $region9: #{tpu_custom_call.1} parent=5 // pred_check
        _
      $region10: #{tpu_custom_call.1} parent=5 // pred_check_branch
        %147 = sbr.rel (%p144) target = $region12
      $region11: #{tpu_custom_call.1} parent=5 // pred_region
        %s148 = ssub.s32 %s19, 1
        // Predicated region
        $region13: #{tpu_custom_call.1} parent=11 // pred_check
          %p149 = pneg %p66
        $region14: #{tpu_custom_call.1} parent=11 // pred_check_branch
          %151 = sbr.rel (%p149) target = $region16
        $region15: #{tpu_custom_call.1} parent=11 // pred_region
          %s153 = ssub.s32 1024, 1024
          %154 = vsyncadd [#allocation6], %s153
          %s155 = sshll.u32 [#allocation5], 4
          %s156 = int_to_ptr.vmem [resolvable:$true] %s155
          %161 = dma.hbm_to_vmem [thread:$0]  %s1, 1024, %s156, [#allocation6], 64, 64, 4
        $region16: #{tpu_custom_call.1} parent=11 // pred_fallthru
          _
      $region12: #{tpu_custom_call.1} parent=5 // pred_fallthru
        _
      %p162 = scmp.lt.s32.totalorder %s19, 2
      // Predicated region
      $region17: #{tpu_custom_call.1} parent=5 // pred_check
        %p163 = pneg %p162
      $region18: #{tpu_custom_call.1} parent=5 // pred_check_branch
        %165 = sbr.rel (%p163) target = $region20
      $region19: #{tpu_custom_call.1} parent=5 // pred_region
        // Predicated region
        $region21: #{tpu_custom_call.1} parent=19 // pred_check
          %p166 = pneg %p39
        $region22: #{tpu_custom_call.1} parent=19 // pred_check_branch
          %168 = sbr.rel (%p166) target = $region24
        $region23: #{tpu_custom_call.1} parent=19 // pred_region
          %s169 = sand.u32 %s29, 1
          %s170 = scalar_lea.sflag [#allocation3], %s169
          %s171 = sand.u32 %s29, 1
          %s172 = smul.addr %s171, 64
          %s173 = scalar_lea.vmem [#allocation2], %s172
          %s174 = smul.u32 16, %s19
          %s176 = ssub.s32 1024, 1024
          %177 = vsyncadd %s170, %s176
          %s178 = smul.addr %s174, 64
          %s179 = scalar_lea.hbm %s0, %s178
          %s180 = sshll.u32 %s173, 4
          %s181 = int_to_ptr.vmem [resolvable:$true] %s180
          %186 = dma.hbm_to_vmem [thread:$0]  %s179, 1024, %s181, %s170, 64, 64, 4
        $region24: #{tpu_custom_call.1} parent=19 // pred_fallthru
          _
      $region20: #{tpu_custom_call.1} parent=5 // pred_fallthru
        _
      %p187 = scmp.le.s32.totalorder 1, %s19
      %p188 = scmp.lt.s32.totalorder %s19, 3
      %p189 = pnand %p187, %p188
      %p190 = pneg %p189
      // Predicated region
      $region25: #{tpu_custom_call.1} parent=5 // pred_check
        _
      $region26: #{tpu_custom_call.1} parent=5 // pred_check_branch
        %192 = sbr.rel (%p189) target = $region28
      $region27: #{tpu_custom_call.1} parent=5 // pred_region
        %s193 = ssub.s32 %s19, 1
        %s194 = sand.u32 %s32, 1
        %s195 = scalar_lea.sflag [#allocation3], %s194
        %s196 = sand.u32 %s32, 1
        %s197 = smul.addr %s196, 64
        %s198 = scalar_lea.vmem [#allocation2], %s197
        // Predicated region
        $region29: #{tpu_custom_call.1} parent=27 // pred_check
          %p199 = pneg %p45
        $region30: #{tpu_custom_call.1} parent=27 // pred_check_branch
          %201 = sbr.rel (%p199) target = $region32
        $region31: #{tpu_custom_call.1} parent=27 // pred_region
          %202 = dma.done %s195, 1024
        $region32: #{tpu_custom_call.1} parent=27 // pred_fallthru
          _
        // Predicated region
        $region33: #{tpu_custom_call.1} parent=27 // pred_check
          %p203 = pneg %p66
        $region34: #{tpu_custom_call.1} parent=27 // pred_check_branch
          %205 = sbr.rel (%p203) target = $region36
        $region35: #{tpu_custom_call.1} parent=27 // pred_region
          %206 = dma.done [#allocation6], 1024
        $region36: #{tpu_custom_call.1} parent=27 // pred_fallthru
          _
        %s207 = sand.u32 %s32, 1
        %s208 = scalar_lea.sflag [#allocation3], %s207
        %s209 = sand.u32 %s32, 1
        %s210 = smul.addr %s209, 64
        %s211 = scalar_lea.vmem [#allocation2], %s210
        %p212 = pneg %p45
        %p213 = pneg %p42
        %p214 = pneg %p66
        %p215 = pneg %p63
        %p216 = pneg %p92
        %p217 = pneg %p89
        %s218 = sand.u32 %s79, 1
        %s219 = scalar_lea.sflag [#allocation4], %s218
        %s220 = sand.u32 %s79, 1
        %s221 = smul.addr %s220, 128
        %s222 = scalar_lea.vmem [#allocation7], %s221
        %p223 = pneg %p113
        %p224 = pneg %p110
        %p225 = pneg %p134
        %p226 = pneg %p131
        %s227 = smul.u32 16, %s24
        %s228 = smul.u32 16, %s24
        %v230 = vld [vmem:[%s198] sm:$0xf]
        %v231 = vld [vmem:[%s198 + $0x4] sm:$0xf]
        %v232 = vld [vmem:[%s198 + $0x8] sm:$0xf]
        %v233 = vld [vmem:[%s198 + $0xc] sm:$0xf]
        %v234 = vld [vmem:[%s198 + $0x10] sm:$0xf]
        %v235 = vld [vmem:[%s198 + $0x14] sm:$0xf]
        %v236 = vld [vmem:[%s198 + $0x18] sm:$0xf]
        %v237 = vld [vmem:[%s198 + $0x1c] sm:$0xf]
        %v238 = vld [vmem:[%s198 + $0x20] sm:$0xf]
        %v239 = vld [vmem:[%s198 + $0x24] sm:$0xf]
        %v240 = vld [vmem:[%s198 + $0x28] sm:$0xf]
        %v241 = vld [vmem:[%s198 + $0x2c] sm:$0xf]
        %v242 = vld [vmem:[%s198 + $0x30] sm:$0xf]
        %v243 = vld [vmem:[%s198 + $0x34] sm:$0xf]
        %v244 = vld [vmem:[%s198 + $0x38] sm:$0xf]
        %v245 = vld [vmem:[%s198 + $0x3c] sm:$0xf]
        %v246 = vld [vmem:[#allocation5] sm:$0xf]
        %v247 = vld [vmem:[#allocation5 + $0x4] sm:$0xf]
        %v248 = vld [vmem:[#allocation5 + $0x8] sm:$0xf]
        %v249 = vld [vmem:[#allocation5 + $0xc] sm:$0xf]
        %v250 = vld [vmem:[#allocation5 + $0x10] sm:$0xf]
        %v251 = vld [vmem:[#allocation5 + $0x14] sm:$0xf]
        %v252 = vld [vmem:[#allocation5 + $0x18] sm:$0xf]
        %v253 = vld [vmem:[#allocation5 + $0x1c] sm:$0xf]
        %v254 = vld [vmem:[#allocation5 + $0x20] sm:$0xf]
        %v255 = vld [vmem:[#allocation5 + $0x24] sm:$0xf]
        %v256 = vld [vmem:[#allocation5 + $0x28] sm:$0xf]
        %v257 = vld [vmem:[#allocation5 + $0x2c] sm:$0xf]
        %v258 = vld [vmem:[#allocation5 + $0x30] sm:$0xf]
        %v259 = vld [vmem:[#allocation5 + $0x34] sm:$0xf]
        %v260 = vld [vmem:[#allocation5 + $0x38] sm:$0xf]
        %v261 = vld [vmem:[#allocation5 + $0x3c] sm:$0xf]
        %v278 = vunpack.c.l.b16 %v230
        %v279 = vunpack.c.l.b16 %v231
        %v280 = vunpack.c.l.b16 %v232
        %v281 = vunpack.c.l.b16 %v233
        %v282 = vunpack.c.l.b16 %v234
        %v283 = vunpack.c.l.b16 %v235
        %v284 = vunpack.c.l.b16 %v236
        %v285 = vunpack.c.l.b16 %v237
        %v286 = vunpack.c.l.b16 %v238
        %v287 = vunpack.c.l.b16 %v239
        %v288 = vunpack.c.l.b16 %v240
        %v289 = vunpack.c.l.b16 %v241
        %v290 = vunpack.c.l.b16 %v242
        %v291 = vunpack.c.l.b16 %v243
        %v292 = vunpack.c.l.b16 %v244
        %v293 = vunpack.c.l.b16 %v245
        %v294 = vpack.c.b16 %v279, %v278
        %v295 = vpack.c.b16 %v281, %v280
        %v296 = vpack.c.b16 %v283, %v282
        %v297 = vpack.c.b16 %v285, %v284
        %v298 = vpack.c.b16 %v287, %v286
        %v299 = vpack.c.b16 %v289, %v288
        %v300 = vpack.c.b16 %v291, %v290
        %v301 = vpack.c.b16 %v293, %v292
        %v326 = vunpack.c.l.b16 %v246
        %v327 = vunpack.c.l.b16 %v247
        %v328 = vunpack.c.l.b16 %v248
        %v329 = vunpack.c.l.b16 %v249
        %v330 = vunpack.c.l.b16 %v250
        %v331 = vunpack.c.l.b16 %v251
        %v332 = vunpack.c.l.b16 %v252
        %v333 = vunpack.c.l.b16 %v253
        %v334 = vunpack.c.l.b16 %v254
        %v335 = vunpack.c.l.b16 %v255
        %v336 = vunpack.c.l.b16 %v256
        %v337 = vunpack.c.l.b16 %v257
        %v338 = vunpack.c.l.b16 %v258
        %v339 = vunpack.c.l.b16 %v259
        %v340 = vunpack.c.l.b16 %v260
        %v341 = vunpack.c.l.b16 %v261
        %v342 = vpack.c.b16 %v327, %v326
        %v343 = vpack.c.b16 %v329, %v328
        %v344 = vpack.c.b16 %v331, %v330
        %v345 = vpack.c.b16 %v333, %v332
        %v346 = vpack.c.b16 %v335, %v334
        %v347 = vpack.c.b16 %v337, %v336
        %v348 = vpack.c.b16 %v339, %v338
        %v349 = vpack.c.b16 %v341, %v340
        %358 = vmatprep.subr.bf16.mxu0 0
        %359 = vmatpush1.bf16.msra.mxu0 %v349
        %360 = vmatprep.subr.bf16.mxu0 0
        %361 = vmatpush1.bf16.msra.mxu0 %v348
        %362 = vmatprep.subr.bf16.mxu0 0
        %363 = vmatpush1.bf16.msra.mxu0 %v347
        %364 = vmatprep.subr.bf16.mxu0 0
        %365 = vmatpush1.bf16.msra.mxu0 %v346
        %366 = vmatprep.subr.bf16.mxu0 0
        %367 = vmatpush1.bf16.msra.mxu0 %v345
        %368 = vmatprep.subr.bf16.mxu0 0
        %369 = vmatpush1.bf16.msra.mxu0 %v344
        %370 = vmatprep.subr.bf16.mxu0 0
        %371 = vmatpush1.bf16.msra.mxu0 %v343
        %372 = vmatprep.subr.bf16.mxu0 0
        %373 = vmatpush1.bf16.msra.mxu0 %v342
        %374 = vmatprep.subr.bf16.mxu0 0
        %375 = vmatpush2.bf16.msra.mxu0 0
        %376 = vmatprep.subr.bf16.mxu0 0
        %377 = vmatpush2.bf16.msra.mxu0 0
        %378 = vmatprep.subr.bf16.mxu0 0
        %379 = vmatpush2.bf16.msra.mxu0 0
        %380 = vmatprep.subr.bf16.mxu0 0
        %381 = vmatpush2.bf16.msra.mxu0 0
        %382 = vmatprep.subr.bf16.mxu0 0
        %383 = vmatpush2.bf16.msra.mxu0 0
        %384 = vmatprep.subr.bf16.mxu0 0
        %385 = vmatpush2.bf16.msra.mxu0 0
        %386 = vmatprep.subr.bf16.mxu0 0
        %387 = vmatpush2.bf16.msra.mxu0 0
        %388 = vmatprep.subr.bf16.mxu0 0
        %389 = vmatpush2.bf16.msra.mxu0 0
        %390 = vmatprep.mubr.bf16.mxu0 0
        %391 = vmatmul.mubr.bf16.gmra.mxu0 %v294
        %v392 = vpop.f32.mrf.mxu0
        %v393 = vadd.f32 0.0, %v392
        %v394 = vpop.f32.mrf.mxu0
        %v395 = vpop.f32.mrf.mxu0
        %v396 = vadd.f32 0.0, %v395
        %v397 = vpop.f32.mrf.mxu0
        %398 = vmatprep.mubr.bf16.mxu0 0
        %399 = vmatmul.mubr.bf16.gmra.mxu0 %v295
        %v400 = vpop.f32.mrf.mxu0
        %v401 = vadd.f32 0.0, %v400
        %v402 = vpop.f32.mrf.mxu0
        %v403 = vpop.f32.mrf.mxu0
        %v404 = vadd.f32 0.0, %v403
        %v405 = vpop.f32.mrf.mxu0
        %406 = vmatprep.mubr.bf16.mxu0 0
        %407 = vmatmul.mubr.bf16.gmra.mxu0 %v296
        %v408 = vpop.f32.mrf.mxu0
        %v409 = vadd.f32 0.0, %v408
        %v410 = vpop.f32.mrf.mxu0
        %v411 = vpop.f32.mrf.mxu0
        %v412 = vadd.f32 0.0, %v411
        %v413 = vpop.f32.mrf.mxu0
        %414 = vmatprep.mubr.bf16.mxu0 0
        %415 = vmatmul.mubr.bf16.gmra.mxu0 %v297
        %v416 = vpop.f32.mrf.mxu0
        %v417 = vadd.f32 0.0, %v416
        %v418 = vpop.f32.mrf.mxu0
        %v419 = vpop.f32.mrf.mxu0
        %v420 = vadd.f32 0.0, %v419
        %v421 = vpop.f32.mrf.mxu0
        %422 = vmatprep.mubr.bf16.mxu0 0
        %423 = vmatmul.mubr.bf16.gmra.mxu0 %v298
        %v424 = vpop.f32.mrf.mxu0
        %v425 = vadd.f32 0.0, %v424
        %v426 = vpop.f32.mrf.mxu0
        %v427 = vpop.f32.mrf.mxu0
        %v428 = vadd.f32 0.0, %v427
        %v429 = vpop.f32.mrf.mxu0
        %430 = vmatprep.mubr.bf16.mxu0 0
        %431 = vmatmul.mubr.bf16.gmra.mxu0 %v299
        %v432 = vpop.f32.mrf.mxu0
        %v433 = vadd.f32 0.0, %v432
        %v434 = vpop.f32.mrf.mxu0
        %v435 = vpop.f32.mrf.mxu0
        %v436 = vadd.f32 0.0, %v435
        %v437 = vpop.f32.mrf.mxu0
        %438 = vmatprep.mubr.bf16.mxu0 0
        %439 = vmatmul.mubr.bf16.gmra.mxu0 %v300
        %v440 = vpop.f32.mrf.mxu0
        %v441 = vadd.f32 0.0, %v440
        %v442 = vpop.f32.mrf.mxu0
        %v443 = vpop.f32.mrf.mxu0
        %v444 = vadd.f32 0.0, %v443
        %v445 = vpop.f32.mrf.mxu0
        %446 = vmatprep.mubr.bf16.mxu0 0
        %447 = vmatmul.mubr.bf16.gmra.mxu0 %v301
        %v448 = vpop.f32.mrf.mxu0
        %v449 = vadd.f32 0.0, %v448
        %v450 = vpop.f32.mrf.mxu0
        %v451 = vpop.f32.mrf.mxu0
        %v452 = vadd.f32 0.0, %v451
        %v453 = vpop.f32.mrf.mxu0
        %454 = vdwg.mxu0
        %455 = vst [vmem:[%s222] sm:$0xff] %v393
        %456 = vst [vmem:[%s222 + $0x8] sm:$0xff] %v396
        %457 = vst [vmem:[%s222 + $0x10] sm:$0xff] %v401
        %458 = vst [vmem:[%s222 + $0x18] sm:$0xff] %v404
        %459 = vst [vmem:[%s222 + $0x20] sm:$0xff] %v409
        %460 = vst [vmem:[%s222 + $0x28] sm:$0xff] %v412
        %461 = vst [vmem:[%s222 + $0x30] sm:$0xff] %v417
        %462 = vst [vmem:[%s222 + $0x38] sm:$0xff] %v420
        %463 = vst [vmem:[%s222 + $0x40] sm:$0xff] %v425
        %464 = vst [vmem:[%s222 + $0x48] sm:$0xff] %v428
        %465 = vst [vmem:[%s222 + $0x50] sm:$0xff] %v433
        %466 = vst [vmem:[%s222 + $0x58] sm:$0xff] %v436
        %467 = vst [vmem:[%s222 + $0x60] sm:$0xff] %v441
        %468 = vst [vmem:[%s222 + $0x68] sm:$0xff] %v444
        %469 = vst [vmem:[%s222 + $0x70] sm:$0xff] %v449
        %470 = vst [vmem:[%s222 + $0x78] sm:$0xff] %v452
        %p471 = scmp.eq.s32.totalorder %s24, 0
        // Predicated region
        $region37: #{tpu_custom_call.1} parent=27 // pred_check
          %p472 = pneg %p471
        $region38: #{tpu_custom_call.1} parent=27 // pred_check_branch
          %474 = sbr.rel (%p472) target = $region40
        $region39: #{tpu_custom_call.1} parent=27 // pred_region
          %475 = vst [vmem:[#allocation8] sm:$0x1] 0.0
          %476 = vst [vmem:[#allocation10] sm:$0x1] 0.0
        $region40: #{tpu_custom_call.1} parent=27 // pred_fallthru
          _
        %v477 = vld [vmem:[#allocation8] sm:$0x1]
        %v478 = vadd.f32 %v393, %v396
        %v479 = vadd.f32 %v478, %v401
        %v480 = vadd.f32 %v479, %v404
        %v481 = vadd.f32 %v480, %v409
        %v482 = vadd.f32 %v481, %v412
        %v483 = vadd.f32 %v482, %v417
        %v484 = vadd.f32 %v483, %v420
        %v485 = vadd.f32 %v484, %v425
        %v486 = vadd.f32 %v485, %v428
        %v487 = vadd.f32 %v486, %v433
        %v488 = vadd.f32 %v487, %v436
        %v489 = vadd.f32 %v488, %v441
        %v490 = vadd.f32 %v489, %v444
        %v491 = vadd.f32 %v490, %v449
        %v492 = vadd.f32 %v491, %v452
        %v493 = vrot.slane %v492, 4
        %v494 = vadd.f32 %v492, %v493
        %v495 = vrot.slane %v494, 2
        %v496 = vadd.f32 %v494, %v495
        %v497 = vrot.slane %v496, 1
        %v498 = vadd.f32 %v496, %v497
        %v499 = vadd.f32 %v477, %v498
        %500 = vst [vmem:[#allocation8] sm:$0x1] %v499
        %v501 = vld [vmem:[#allocation10] sm:$0x1]
        %v502 = vmul.f32 %v393, %v393
        %v503 = vmul.f32 %v396, %v396
        %v504 = vmul.f32 %v401, %v401
        %v505 = vmul.f32 %v404, %v404
        %v506 = vmul.f32 %v409, %v409
        %v507 = vmul.f32 %v412, %v412
        %v508 = vmul.f32 %v417, %v417
        %v509 = vmul.f32 %v420, %v420
        %v510 = vmul.f32 %v425, %v425
        %v511 = vmul.f32 %v428, %v428
        %v512 = vmul.f32 %v433, %v433
        %v513 = vmul.f32 %v436, %v436
        %v514 = vmul.f32 %v441, %v441
        %v515 = vmul.f32 %v444, %v444
        %v516 = vmul.f32 %v449, %v449
        %v517 = vmul.f32 %v452, %v452
        %v518 = vadd.f32 %v502, %v503
        %v519 = vadd.f32 %v518, %v504
        %v520 = vadd.f32 %v519, %v505
        %v521 = vadd.f32 %v520, %v506
        %v522 = vadd.f32 %v521, %v507
        %v523 = vadd.f32 %v522, %v508
        %v524 = vadd.f32 %v523, %v509
        %v525 = vadd.f32 %v524, %v510
        %v526 = vadd.f32 %v525, %v511
        %v527 = vadd.f32 %v526, %v512
        %v528 = vadd.f32 %v527, %v513
        %v529 = vadd.f32 %v528, %v514
        %v530 = vadd.f32 %v529, %v515
        %v531 = vadd.f32 %v530, %v516
        %v532 = vadd.f32 %v531, %v517
        %v533 = vrot.slane %v532, 4
        %v534 = vadd.f32 %v532, %v533
        %v535 = vrot.slane %v534, 2
        %v536 = vadd.f32 %v534, %v535
        %v537 = vrot.slane %v536, 1
        %v538 = vadd.f32 %v536, %v537
        %v539 = vadd.f32 %v501, %v538
        %540 = vst [vmem:[#allocation10] sm:$0x1] %v539
        %p541 = scmp.eq.s32.totalorder %s24, 1
        // Predicated region
        $region41: #{tpu_custom_call.1} parent=27 // pred_check
          %p542 = pneg %p541
        $region42: #{tpu_custom_call.1} parent=27 // pred_check_branch
          %544 = sbr.rel (%p542) target = $region44
        $region43: #{tpu_custom_call.1} parent=27 // pred_region
          %v545 = vld [vmem:[#allocation8] sm:$0x1]
          %v546 = vmul.f32 %v545, 0.00390625
          %v547 = vld [vmem:[#allocation10] sm:$0x1]
          %v548 = vmul.f32 %v547, 0.00390625
          %v549 = vmul.f32 %v546, %v546
          %v550 = vsub.f32 %v548, %v549
          %v551 = vmax.f32 %v550, 0.0
          %552 = vst [vmem:[#allocation8] sm:$0x1] %v546
          %v553 = vadd.f32 %v551, 1e-05
          %v554 = vrsqrt.pop %v553
          %555 = vst [vmem:[#allocation10] sm:$0x1] %v554
        $region44: #{tpu_custom_call.1} parent=27 // pred_fallthru
          _
        %s556 = sand.u32 %s79, 1
        %s557 = scalar_lea.sflag [#allocation4], %s556
        %s558 = sand.u32 %s79, 1
        %s559 = smul.addr %s558, 128
        %s560 = scalar_lea.vmem [#allocation7], %s559
        // Predicated region
        $region45: #{tpu_custom_call.1} parent=27 // pred_check
          %p561 = pneg %p89
        $region46: #{tpu_custom_call.1} parent=27 // pred_check_branch
          %563 = sbr.rel (%p561) target = $region48
        $region47: #{tpu_custom_call.1} parent=27 // pred_region
          %s564 = smul.u32 16, %s24
          %s566 = ssub.s32 2048, 2048
          %567 = vsyncadd %s557, %s566
          %s568 = smul.addr %s564, 128
          %s569 = scalar_lea.hbm %s2, %s568
          %s570 = sshll.u32 %s560, 4
          %s571 = int_to_ptr.vmem [resolvable:$true] %s570
          %576 = dma.vmem_to_hbm [thread:$0]  %s571, 2048, %s569, %s557, 128, 128, 8
        $region48: #{tpu_custom_call.1} parent=27 // pred_fallthru
          _
        // Predicated region
        $region49: #{tpu_custom_call.1} parent=27 // pred_check
          %p577 = pneg %p110
        $region50: #{tpu_custom_call.1} parent=27 // pred_check_branch
          %579 = sbr.rel (%p577) target = $region52
        $region51: #{tpu_custom_call.1} parent=27 // pred_region
          %s581 = ssub.s32 16, 16
          %582 = vsyncadd [#allocation9], %s581
          %s584 = sshll.u32 [#allocation8], 4
          %s585 = int_to_ptr.vmem [resolvable:$true] %s584
          %587 = dma.vmem_to_hbm [thread:$0]  %s585, 16, %s3, [#allocation9]
        $region52: #{tpu_custom_call.1} parent=27 // pred_fallthru
          _
        // Predicated region
        $region53: #{tpu_custom_call.1} parent=27 // pred_check
          %p588 = pneg %p131
        $region54: #{tpu_custom_call.1} parent=27 // pred_check_branch
          %590 = sbr.rel (%p588) target = $region56
        $region55: #{tpu_custom_call.1} parent=27 // pred_region
          %s592 = ssub.s32 16, 16
          %593 = vsyncadd [#allocation9], %s592
          %s595 = sshll.u32 [#allocation10], 4
          %s596 = int_to_ptr.vmem [resolvable:$true] %s595
          %598 = dma.vmem_to_hbm [thread:$0]  %s596, 16, %s4, [#allocation9]
        $region56: #{tpu_custom_call.1} parent=27 // pred_fallthru
          _
        // Predicated region
        $region57: #{tpu_custom_call.1} parent=27 // pred_check
          %p599 = pneg %p110
        $region58: #{tpu_custom_call.1} parent=27 // pred_check_branch
          %601 = sbr.rel (%p599) target = $region60
        $region59: #{tpu_custom_call.1} parent=27 // pred_region
          %602 = dma.done [#allocation9], 16
        $region60: #{tpu_custom_call.1} parent=27 // pred_fallthru
          _
        // Predicated region
        $region61: #{tpu_custom_call.1} parent=27 // pred_check
          %p603 = pneg %p131
        $region62: #{tpu_custom_call.1} parent=27 // pred_check_branch
          %605 = sbr.rel (%p603) target = $region64
        $region63: #{tpu_custom_call.1} parent=27 // pred_region
          %606 = dma.done [#allocation9], 16
        $region64: #{tpu_custom_call.1} parent=27 // pred_fallthru
          _
      $region28: #{tpu_custom_call.1} parent=5 // pred_fallthru
        _
      %p607 = scmp.le.s32.totalorder 2, %s19
      // Predicated region
      $region65: #{tpu_custom_call.1} parent=5 // pred_check
        %p608 = pneg %p607
      $region66: #{tpu_custom_call.1} parent=5 // pred_check_branch
        %610 = sbr.rel (%p608) target = $region68
      $region67: #{tpu_custom_call.1} parent=5 // pred_region
        %s611 = ssub.s32 %s19, 2
        // Predicated region
        $region69: #{tpu_custom_call.1} parent=67 // pred_check
          %p612 = pneg %p95
        $region70: #{tpu_custom_call.1} parent=67 // pred_check_branch
          %614 = sbr.rel (%p612) target = $region72
        $region71: #{tpu_custom_call.1} parent=67 // pred_region
          %s615 = sand.u32 %s80, 1
          %s616 = scalar_lea.sflag [#allocation4], %s615
          %s617 = sand.u32 %s80, 1
          %s618 = smul.addr %s617, 128
          %s619 = scalar_lea.vmem [#allocation7], %s618
          %620 = dma.done %s616, 2048
        $region72: #{tpu_custom_call.1} parent=67 // pred_fallthru
          _
      $region68: #{tpu_custom_call.1} parent=5 // pred_fallthru
        _
    $region6: #{tpu_custom_call.1} parent=1 // loop_footer
      %s23 = sadd.s32 1, %s19
    $region7: #{tpu_custom_call.1} parent=1 // loop_footer_branch
      %18 = sbr.rel target = $region3
    $region8: #{tpu_custom_call.1} parent=1 // loop_exit
      _
    %621 = vsyncpa [#allocation3], 1
    %s622 = scalar_lea.sflag [#allocation3], 1
    %623 = vsyncpa %s622, 1
    %624 = vsyncpa [#allocation6], 1
    %625 = vsyncpa [#allocation4], 1
    %s626 = scalar_lea.sflag [#allocation4], 1
    %627 = vsyncpa %s626, 1
    %628 = vsyncpa [#allocation9], 1

</llo_original>
